<compile_context>
chip_gen: v7x
topology: tpu7x:2x2x1
jax: 0.10.0
libtpu: 0.0.40
codegen_flags: <defaults>
</compile_context>

<pallas_src>
import math
import numpy as np
import jax
import jax.numpy as jnp
from jax.experimental import pallas as pl
from jax.experimental.pallas import tpu as pltpu


# ----------------------------- Pallas kernel ------------------------------ #

def mean_agg_kernel(mask_ref, embed_ref, inv_ref, out_ref, acc_ref):
    """One (tm, tn) output tile; grid axis 2 (k) reduces over U in tk chunks."""
    k = pl.program_id(2)

    @pl.when(k == 0)
    def _():
        acc_ref[...] = jnp.zeros_like(acc_ref)

    # MXU partial product, f32 accumulate. No other per-step work.
    acc_ref[...] += jnp.dot(mask_ref[...], embed_ref[...],
                            preferred_element_type=jnp.float32)

    @pl.when(k == pl.num_programs(2) - 1)
    def _():
        # inv_ref is (tm, 1) exact-f32 inverse row sums; broadcast multiply.
        out_ref[...] = (acc_ref[...] * inv_ref[...]).astype(out_ref.dtype)


def _round_up(x, m):
    return ((x + m - 1) // m) * m


def _select_tiles(B, U, D):
    """Per-generation-safe tile selection (see header comments)."""
    D_pad = _round_up(max(D, 1), 128)
    # Single j block whenever D fits; 512 is a multiple of 256 (full v6e MXU
    # width) and 128 (native v5e width).
    tn = D_pad if D_pad <= 512 else 512
    tm = 256 if B >= 512 else _round_up(max(B, 16), 16)
    tk = 2048 if U >= 2048 else _round_up(max(U, 128), 128)
    # v7x has 2 TensorCores: if the "parallel" axes collapsed to one block but
    # the reduction is long, halve tm so both cores get work.
    n_par = (_round_up(B, tm) // tm) * (_round_up(D, tn) // tn)
    if n_par == 1 and _round_up(U, tk) // tk >= 2 and tm >= 32 and tm % 32 == 0:
        tm //= 2
    return tm, tn, tk


def mean_aggregate_pallas(mask, embed, *, tm=None, tn=None, tk=None):
    """Row-normalized matmul: (mask / mask.sum(1)) @ embed  ->  (B, D) float32.

    mask:  (B, U) float (numpy or jax array)
    embed: (U, D) float

    Padding to tile multiples and the bf16 cast are done host-side with numpy
    (zero padding is semantically neutral); exact f32 row sums are computed
    host-side so the kernel body is a pure MXU accumulate.
    """
    mask_np = np.asarray(mask, dtype=np.float32)
    embed_np = np.asarray(embed, dtype=np.float32)
    B, U = mask_np.shape
    U2, D = embed_np.shape
    assert U == U2, (U, U2)

    atm, atn, atk = _select_tiles(B, U, D)
    tm = atm if tm is None else tm
    tn = atn if tn is None else tn
    tk = atk if tk is None else tk

    B_pad = _round_up(B, tm)
    U_pad = _round_up(U, tk)
    D_pad = _round_up(D, tn)

    # Host-side padding + bf16 cast (avoids an extra on-device full-array copy
    # and halves H2D / HBM bytes for the bandwidth-dominant mask operand).
    mask_p = np.zeros((B_pad, U_pad), dtype=jnp.bfloat16)
    mask_p[:B, :U] = mask_np.astype(jnp.bfloat16)
    embed_p = np.zeros((U_pad, D_pad), dtype=jnp.bfloat16)
    embed_p[:U, :D] = embed_np.astype(jnp.bfloat16)

    # Exact f32 inverse row sums (padded / all-zero rows -> output 0).
    rowsum = mask_np.sum(axis=1, keepdims=True)
    safe = np.where(rowsum > 0.0, rowsum, 1.0)
    inv = np.where(rowsum > 0.0, 1.0 / safe, 0.0).astype(np.float32)
    inv_p = np.zeros((B_pad, 1), dtype=np.float32)
    inv_p[:B, :] = inv

    grid = (B_pad // tm, D_pad // tn, U_pad // tk)

    out = pl.pallas_call(
        mean_agg_kernel,
        out_shape=jax.ShapeDtypeStruct((B_pad, D_pad), jnp.float32),
        grid_spec=pltpu.PrefetchScalarGridSpec(
            num_scalar_prefetch=0,
            grid=grid,
            in_specs=[
                pl.BlockSpec((tm, tk), lambda i, j, k: (i, k)),   # mask tile
                pl.BlockSpec((tk, tn), lambda i, j, k: (k, j)),   # embed tile
                pl.BlockSpec((tm, 1), lambda i, j, k: (i, 0)),    # inv row sums
            ],
            out_specs=pl.BlockSpec((tm, tn), lambda i, j, k: (i, j)),
            scratch_shapes=[
                pltpu.VMEM((tm, tn), jnp.float32),   # matmul accumulator
            ],
        ),
        compiler_params=pltpu.CompilerParams(
            dimension_semantics=("parallel", "parallel", "arbitrary"),
            vmem_limit_bytes=48 * 1024 * 1024,   # headroom under v7x 64 MiB VMEM
        ),
    )(jnp.asarray(mask_p), jnp.asarray(embed_p), jnp.asarray(inv_p))

    if B_pad != B or D_pad != D:      # skip the slice copy when tile-aligned
        out = out[:B, :D]
    return out


# ------------------- host-side graph preprocessing (spec) ------------------ #

def build_mask_host(nodes, to_neighs, time_neighs, time):
    """Replicates the module's dict/set preprocessing exactly.

    Returns (unnormalized mask ndarray (B, U), unique_nodes_list).
    """
    samp_neighs = []
    dic_temp = {}
    dic_edge = {}
    total_value = {}
    nodes = np.array(nodes)
    for i in range(0, len(to_neighs)):
        samp_neighs.append([int(nodes[i])])
        dic_edge[i] = {}
        dic_temp[int(nodes[i])] = 1
        total_value[i] = 0
        for j in range(0, len(to_neighs[i])):
            if time_neighs[i][j] <= time:
                w = math.exp((time_neighs[i][j] - time) / 100)
                if to_neighs[i][j] not in dic_edge[i]:
                    dic_edge[i][to_neighs[i][j]] = w
                else:
                    dic_edge[i][to_neighs[i][j]] += w
                total_value[i] += float(w)
                samp_neighs[-1].append(to_neighs[i][j])
                dic_temp[to_neighs[i][j]] = 1
        if total_value[i] == 0:
            total_value[i] = 1
    unique_nodes_list = list([key for key in dic_temp])
    unique_nodes = {n: i for i, n in enumerate(unique_nodes_list)}
    mask = np.zeros((len(samp_neighs), len(unique_nodes)), dtype=np.float32)
    for key1 in dic_edge:
        for key2 in dic_edge[key1]:
            mask[key1, unique_nodes[key2]] = dic_edge[key1][key2] / total_value[key1]
    for i in range(0, len(nodes)):
        mask[i, unique_nodes[int(nodes[i])]] += 1.0
    return mask, unique_nodes_list


# ---------------------------------- demo ----------------------------------- #

if __name__ == "__main__":
    # deterministic synthetic graph / features
    N_NODES = 32      # total nodes in the graph
    D = 32            # feature dim
    B = 8             # batch of nodes to aggregate for
    CUR_TIME = 50

    # features(ids) in the module is a lookup; here a deterministic table.
    key = jax.random.PRNGKey(0)
    feat_table = jax.random.normal(key, (N_NODES, D), dtype=jnp.float32)

    rng = np.random.RandomState(0)
    nodes = list(range(B))
    to_neighs = []
    time_neighs = []
    for i in range(B):
        n_nb = int(rng.randint(3, 7))
        to_neighs.append(rng.randint(0, N_NODES, size=n_nb).tolist())
        time_neighs.append(rng.randint(0, 100, size=n_nb).tolist())

    # host preprocessing (identical to the PyTorch module)
    mask_np, unique_nodes_list = build_mask_host(
        nodes, to_neighs, time_neighs, CUR_TIME)

    # embed_matrix = features(LongTensor(unique_nodes_list))
    embed_np = np.asarray(feat_table)[np.array(unique_nodes_list, dtype=np.int64)]

    # Pallas kernel: tiled matmul + post-matmul row normalization
    to_feats = mean_aggregate_pallas(mask_np, embed_np)
    to_feats = jax.block_until_ready(to_feats)

    # reference (f32 numpy) of the module's semantics:
    #   num_neigh = mask.sum(1); (mask / num_neigh) @ embed
    num_neigh = mask_np.sum(axis=1, keepdims=True)
    ref = (mask_np / num_neigh) @ embed_np

    # tolerance accounts for bf16 quantization of mask/embed (normalization
    # itself is exact f32 now)
    np.testing.assert_allclose(np.asarray(to_feats), ref, rtol=2e-2, atol=2e-2)

    print("KERNEL_OK")
</pallas_src>

<mosaic_0001>
module attributes {stable_mosaic.version = 11 : i64} {
  func.func @mean_agg_kernel(%arg0: i32, %arg1: i32, %arg2: i32, %arg3: memref<16x128xbf16, #tpu.memory_space<vmem>>, %arg4: memref<128x128xbf16, #tpu.memory_space<vmem>>, %arg5: memref<16x1xf32, #tpu.memory_space<vmem>>, %arg6: memref<16x128xf32, #tpu.memory_space<vmem>>, %arg7: memref<16x128xf32, #tpu.memory_space<vmem>>) attributes {dimension_semantics = [#tpu.dimension_semantics<parallel>, #tpu.dimension_semantics<parallel>, #tpu.dimension_semantics<arbitrary>], iteration_bounds = array<i64: 1, 1, 1>, scalar_prefetch = 0 : i64, scratch_operands = 1 : i64, tpu.core_type = #tpu.core_type<tc>, window_params = [{transform_indices = @transform_0, window_bounds = array<i64: 16, 128>}, {transform_indices = @transform_1, window_bounds = array<i64: 128, 128>}, {transform_indices = @transform_2, window_bounds = array<i64: 16, 1>}, {transform_indices = @transform_3, window_bounds = array<i64: 16, 128>}]} {
    %c0_i32 = arith.constant 0 : i32
    %0 = arith.cmpi eq, %arg2, %c0_i32 : i32
    %1 = arith.extui %0 : i1 to i32
    %c0_i32_0 = arith.constant 0 : i32
    %2 = arith.cmpi ne, %1, %c0_i32_0 : i32
    scf.if %2 {
      %cst_10 = arith.constant 0.000000e+00 : f32
      %12 = vector.broadcast %cst_10 : f32 to vector<16x128xf32>
      %c0_11 = arith.constant 0 : index
      %c0_12 = arith.constant 0 : index
      %13 = vector.load %arg7[%c0_11, %c0_12] : memref<16x128xf32, #tpu.memory_space<vmem>>, vector<16x128xf32>
      tpu.vector_store %arg7[%c0_11, %c0_12], %12 {strides = array<i32>} : memref<16x128xf32, #tpu.memory_space<vmem>>, vector<16x128xf32>,
    } else {
    }
    %c0 = arith.constant 0 : index
    %c0_1 = arith.constant 0 : index
    %3 = vector.load %arg7[%c0, %c0_1] : memref<16x128xf32, #tpu.memory_space<vmem>>, vector<16x128xf32>
    %c0_2 = arith.constant 0 : index
    %c0_3 = arith.constant 0 : index
    %4 = vector.load %arg3[%c0_2, %c0_3] : memref<16x128xbf16, #tpu.memory_space<vmem>>, vector<16x128xbf16>
    %c0_4 = arith.constant 0 : index
    %c0_5 = arith.constant 0 : index
    %5 = vector.load %arg4[%c0_4, %c0_5] : memref<128x128xbf16, #tpu.memory_space<vmem>>, vector<128x128xbf16>
    %cst = arith.constant dense<0.000000e+00> : vector<16x128xf32>
    %6 = tpu.matmul %4, %5, %cst {dimension_numbers = #tpu.dot_dimension_numbers<[1], [0], [0], [1], [0, 0, 1, 1], [], []>} : vector<16x128xbf16>, vector<128x128xbf16>, vector<16x128xf32> -> vector<16x128xf32>
    %7 = arith.addf %3, %6 : vector<16x128xf32>
    %c0_6 = arith.constant 0 : index
    %c0_7 = arith.constant 0 : index
    %8 = vector.load %arg7[%c0_6, %c0_7] : memref<16x128xf32, #tpu.memory_space<vmem>>, vector<16x128xf32>
    tpu.vector_store %arg7[%c0_6, %c0_7], %7 {strides = array<i32>} : memref<16x128xf32, #tpu.memory_space<vmem>>, vector<16x128xf32>,
    %c0_i32_8 = arith.constant 0 : i32
    %9 = arith.cmpi eq, %arg2, %c0_i32_8 : i32
    %10 = arith.extui %9 : i1 to i32
    %c0_i32_9 = arith.constant 0 : i32
    %11 = arith.cmpi ne, %10, %c0_i32_9 : i32
    scf.if %11 {
      %c0_10 = arith.constant 0 : index
      %c0_11 = arith.constant 0 : index
      %12 = vector.load %arg7[%c0_10, %c0_11] : memref<16x128xf32, #tpu.memory_space<vmem>>, vector<16x128xf32>
      %c0_12 = arith.constant 0 : index
      %c0_13 = arith.constant 0 : index
      %13 = vector.load %arg5[%c0_12, %c0_13] : memref<16x1xf32, #tpu.memory_space<vmem>>, vector<16x1xf32>
      %14 = vector.broadcast %13 : vector<16x1xf32> to vector<16x128xf32>
      %15 = arith.mulf %12, %14 : vector<16x128xf32>
      %c0_14 = arith.constant 0 : index
      %c0_15 = arith.constant 0 : index
      %16 = vector.load %arg6[%c0_14, %c0_15] : memref<16x128xf32, #tpu.memory_space<vmem>>, vector<16x128xf32>
      tpu.vector_store %arg6[%c0_14, %c0_15], %15 {strides = array<i32>} : memref<16x128xf32, #tpu.memory_space<vmem>>, vector<16x128xf32>,
    } else {
    }
    return
  }
  func.func @transform_0(%arg0: i32, %arg1: i32, %arg2: i32) -> (i32, i32) {
    %c0_i32 = arith.constant 0 : i32
    return %arg0, %arg2 : i32, i32
  }
  func.func @transform_1(%arg0: i32, %arg1: i32, %arg2: i32) -> (i32, i32) {
    %c0_i32 = arith.constant 0 : i32
    return %arg2, %arg1 : i32, i32
  }
  func.func @transform_2(%arg0: i32, %arg1: i32, %arg2: i32) -> (i32, i32) {
    %c0_i32 = arith.constant 0 : i32
    %c0_i32_0 = arith.constant 0 : i32
    return %arg0, %c0_i32 : i32, i32
  }
  func.func @transform_3(%arg0: i32, %arg1: i32, %arg2: i32) -> (i32, i32) {
    %c0_i32 = arith.constant 0 : i32
    return %arg0, %arg1 : i32, i32
  }
}

</mosaic_0001>

<llo_original>
// kernel: tpu_custom_call.1
$region0: #{tpu_custom_call.1}
  #allocation0 [shape = 'u32[]', space=smem, size = 0x4, offset = 0x4, fixed_abs, tag = 'smem constant byte address 0x4 - core index']
  #allocation1 [shape = 'u32[144,128]{1,0:T(1,128)}', space=vmem, size = 0x12000, scoped, tag = 'internal scratch']
  #allocation2 [shape = 'f32[16,128]{1,0:T(8,128)}', space=vmem, size = 0x2000, scoped, tag = 'scratch operand']
  %s0 = inlined_call_operand.vmem [shape: bf16[16,128], index: 0, kind: input, shape index: {}]
  %s1 = inlined_call_operand.hbm [shape: bf16[128,128], index: 1, kind: input, shape index: {}]
  %s2 = inlined_call_operand.vmem [shape: f32[16,1], index: 2, kind: input, shape index: {}]
  %s3 = inlined_call_operand.hbm [shape: f32[16,128], index: 3, kind: output, shape index: {}]
  %s4 = sld [smem:[#allocation0]]
  $region34: #{tpu_custom_call.1} parent=0
    _
  %s6 = ssub.s32 1, %s4
  %s7 = scalar_select 0, %s6, %s4
  $region1: #{tpu_custom_call.1} parent=0
    #allocation3 [shape = 'u8[32768]{0}', space=vmem, size = 0x8000, scoped, tag = 'input window, operand 1, single buffered']
    #allocation4 [shape = 's32[1]{0}', space=sflag, size = 0x4, scoped, tag = 'scoped memory for tpu_custom_call.1']
    #allocation5 [shape = 's32[1]{0}', space=sflag, size = 0x4, scoped, tag = 'scoped memory for tpu_custom_call.1']
    #allocation6 [shape = 'u8[8192]{0}', space=vmem, size = 0x2000, scoped, tag = 'output window, operand 0, single buffered']
    %8 = vsyncpa [#allocation4], 0
    %9 = vsyncpa [#allocation5], 0
    // Predicated region
    $region2: #{tpu_custom_call.1} parent=1 // pred_check
      _
    $region3: #{tpu_custom_call.1} parent=1 // pred_check_branch
      %11 = sbr.rel (0) target = $region5
    $region4: #{tpu_custom_call.1} parent=1 // pred_region
      _
    $region5: #{tpu_custom_call.1} parent=1 // pred_fallthru
      _
    // Predicated region
    $region6: #{tpu_custom_call.1} parent=1 // pred_check
      _
    $region7: #{tpu_custom_call.1} parent=1 // pred_check_branch
      %13 = sbr.rel (0) target = $region9
    $region8: #{tpu_custom_call.1} parent=1 // pred_region
      %s15 = ssub.s32 1024, 1024
      %16 = vsyncadd [#allocation4], %s15
      %s17 = sshll.u32 [#allocation3], 4
      %s18 = int_to_ptr.vmem [resolvable:$true] %s17
      %23 = dma.hbm_to_vmem [thread:$0]  %s1, 1024, %s18, [#allocation4], 64, 64, 4
    $region9: #{tpu_custom_call.1} parent=1 // pred_fallthru
      _
    // Predicated region
    $region10: #{tpu_custom_call.1} parent=1 // pred_check
      _
    $region11: #{tpu_custom_call.1} parent=1 // pred_check_branch
      %25 = sbr.rel (0) target = $region13
    $region12: #{tpu_custom_call.1} parent=1 // pred_region
      _
    $region13: #{tpu_custom_call.1} parent=1 // pred_fallthru
      _
    // Predicated region
    $region14: #{tpu_custom_call.1} parent=1 // pred_check
      _
    $region15: #{tpu_custom_call.1} parent=1 // pred_check_branch
      %27 = sbr.rel (0) target = $region17
    $region16: #{tpu_custom_call.1} parent=1 // pred_region
      %28 = dma.done [#allocation4], 1024
    $region17: #{tpu_custom_call.1} parent=1 // pred_fallthru
      _
    %p30 = scmp.eq.s32.totalorder 0, 0
    // Predicated region
    $region18: #{tpu_custom_call.1} parent=1 // pred_check
      %p31 = pneg %p30
    $region19: #{tpu_custom_call.1} parent=1 // pred_check_branch
      %33 = sbr.rel (%p31) target = $region21
    $region20: #{tpu_custom_call.1} parent=1 // pred_region
      %34 = vst [vmem:[#allocation2] sm:$0xff] 0.0
      %35 = vst [vmem:[#allocation2 + $0x8] sm:$0xff] 0.0
    $region21: #{tpu_custom_call.1} parent=1 // pred_fallthru
      _
    %v36 = vld [vmem:[#allocation2] sm:$0xff]
    %v37 = vld [vmem:[#allocation2 + $0x8] sm:$0xff]
    %v38 = vld [vmem:[%s0] sm:$0xf]
    %v39 = vld [vmem:[%s0 + $0x4] sm:$0xf]
    %v40 = vld [vmem:[#allocation3] sm:$0xf]
    %v41 = vld [vmem:[#allocation3 + $0x4] sm:$0xf]
    %v42 = vld [vmem:[#allocation3 + $0x8] sm:$0xf]
    %v43 = vld [vmem:[#allocation3 + $0xc] sm:$0xf]
    %v44 = vld [vmem:[#allocation3 + $0x10] sm:$0xf]
    %v45 = vld [vmem:[#allocation3 + $0x14] sm:$0xf]
    %v46 = vld [vmem:[#allocation3 + $0x18] sm:$0xf]
    %v47 = vld [vmem:[#allocation3 + $0x1c] sm:$0xf]
    %v48 = vld [vmem:[#allocation3 + $0x20] sm:$0xf]
    %v49 = vld [vmem:[#allocation3 + $0x24] sm:$0xf]
    %v50 = vld [vmem:[#allocation3 + $0x28] sm:$0xf]
    %v51 = vld [vmem:[#allocation3 + $0x2c] sm:$0xf]
    %v52 = vld [vmem:[#allocation3 + $0x30] sm:$0xf]
    %v53 = vld [vmem:[#allocation3 + $0x34] sm:$0xf]
    %v54 = vld [vmem:[#allocation3 + $0x38] sm:$0xf]
    %v55 = vld [vmem:[#allocation3 + $0x3c] sm:$0xf]
    %v58 = vunpack.c.l.b16 %v38
    %v59 = vunpack.c.l.b16 %v39
    %v60 = vpack.c.b16 %v59, %v58
    %v78 = vunpack.c.l.b16 %v40
    %v79 = vunpack.c.l.b16 %v41
    %v80 = vunpack.c.l.b16 %v42
    %v81 = vunpack.c.l.b16 %v43
    %v82 = vunpack.c.l.b16 %v44
    %v83 = vunpack.c.l.b16 %v45
    %v84 = vunpack.c.l.b16 %v46
    %v85 = vunpack.c.l.b16 %v47
    %v86 = vunpack.c.l.b16 %v48
    %v87 = vunpack.c.l.b16 %v49
    %v88 = vunpack.c.l.b16 %v50
    %v89 = vunpack.c.l.b16 %v51
    %v90 = vunpack.c.l.b16 %v52
    %v91 = vunpack.c.l.b16 %v53
    %v92 = vunpack.c.l.b16 %v54
    %v93 = vunpack.c.l.b16 %v55
    %v94 = vpack.c.b16 %v79, %v78
    %v95 = vpack.c.b16 %v81, %v80
    %v96 = vpack.c.b16 %v83, %v82
    %v97 = vpack.c.b16 %v85, %v84
    %v98 = vpack.c.b16 %v87, %v86
    %v99 = vpack.c.b16 %v89, %v88
    %v100 = vpack.c.b16 %v91, %v90
    %v101 = vpack.c.b16 %v93, %v92
    %110 = vmatprep.subr.bf16.mxu0 0
    %111 = vmatpush1.bf16.msra.mxu0 %v94
    %112 = vmatprep.subr.bf16.mxu0 0
    %113 = vmatpush1.bf16.msra.mxu0 %v95
    %114 = vmatprep.subr.bf16.mxu0 0
    %115 = vmatpush1.bf16.msra.mxu0 %v96
    %116 = vmatprep.subr.bf16.mxu0 0
    %117 = vmatpush1.bf16.msra.mxu0 %v97
    %118 = vmatprep.subr.bf16.mxu0 0
    %119 = vmatpush1.bf16.msra.mxu0 %v98
    %120 = vmatprep.subr.bf16.mxu0 0
    %121 = vmatpush1.bf16.msra.mxu0 %v99
    %122 = vmatprep.subr.bf16.mxu0 0
    %123 = vmatpush1.bf16.msra.mxu0 %v100
    %124 = vmatprep.subr.bf16.mxu0 0
    %125 = vmatpush1.bf16.msra.mxu0 %v101
    %126 = vmatprep.subr.bf16.mxu0 0
    %127 = vmatpush1.bf16.msra.mxu0 0
    %128 = vmatprep.subr.bf16.mxu0 0
    %129 = vmatpush1.bf16.msra.mxu0 0
    %130 = vmatprep.subr.bf16.mxu0 0
    %131 = vmatpush1.bf16.msra.mxu0 0
    %132 = vmatprep.subr.bf16.mxu0 0
    %133 = vmatpush1.bf16.msra.mxu0 0
    %134 = vmatprep.subr.bf16.mxu0 0
    %135 = vmatpush1.bf16.msra.mxu0 0
    %136 = vmatprep.subr.bf16.mxu0 0
    %137 = vmatpush1.bf16.msra.mxu0 0
    %138 = vmatprep.subr.bf16.mxu0 0
    %139 = vmatpush1.bf16.msra.mxu0 0
    %140 = vmatprep.subr.bf16.mxu0 0
    %141 = vmatpush1.bf16.msra.mxu0 0
    %142 = vmatprep.mubr.bf16.mxu0 0
    %143 = vmatmul.mubr.bf16.gmra.mrb[0].mxu0 %v60
    %v144 = vpop.f32.mrb[0].mxu0
    %v145 = vadd.f32 0.0, %v144
    %v146 = vpop.f32.mrb[0].mxu0
    %v147 = vpop.f32.mrb[0].mxu0
    %v148 = vadd.f32 0.0, %v147
    %v149 = vpop.f32.mrb[0].mxu0
    %150 = vdwg.mxu0
    %v151 = vadd.f32 %v36, %v145
    %v152 = vadd.f32 %v37, %v148
    %153 = vst [vmem:[#allocation2] sm:$0xff] %v151
    %154 = vst [vmem:[#allocation2 + $0x8] sm:$0xff] %v152
    // Predicated region
    $region22: #{tpu_custom_call.1} parent=1 // pred_check
      %p155 = pneg %p30
    $region23: #{tpu_custom_call.1} parent=1 // pred_check_branch
      %157 = sbr.rel (%p155) target = $region25
    $region24: #{tpu_custom_call.1} parent=1 // pred_region
      %v158 = vld [vmem:[#allocation2] sm:$0xff]
      %v159 = vld [vmem:[#allocation2 + $0x8] sm:$0xff]
      %v160 = vld [vmem:[%s2] sm:$0xff]
      %v161 = vld [vmem:[%s2 + $0x8] sm:$0xff]
      %163 = vset.pattern.permute.xlu0 0
      %164 = vperm.xlu0 %163, %v160
      %v165 = vpop.permute.xlu0 %164
      %168 = vset.pattern.permute.xlu0 0
      %169 = vperm.xlu0 %168, %v161
      %v170 = vpop.permute.xlu0 %169
      %v172 = vmul.f32 %v158, %v165
      %v173 = vmul.f32 %v159, %v170
      %174 = vst [vmem:[#allocation6] sm:$0xff] %v172
      %175 = vst [vmem:[#allocation6 + $0x8] sm:$0xff] %v173
    $region25: #{tpu_custom_call.1} parent=1 // pred_fallthru
      _
    // Predicated region
    $region26: #{tpu_custom_call.1} parent=1 // pred_check
      _
    $region27: #{tpu_custom_call.1} parent=1 // pred_check_branch
      %177 = sbr.rel (0) target = $region29
    $region28: #{tpu_custom_call.1} parent=1 // pred_region
      %s179 = ssub.s32 256, 256
      %180 = vsyncadd [#allocation5], %s179
      %s181 = sshll.u32 [#allocation6], 4
      %s182 = int_to_ptr.vmem [resolvable:$true] %s181
      %187 = dma.vmem_to_hbm [thread:$0]  %s182, 256, %s3, [#allocation5], 128, 128, 8
    $region29: #{tpu_custom_call.1} parent=1 // pred_fallthru
      _
    // Predicated region
    $region30: #{tpu_custom_call.1} parent=1 // pred_check
      _
    $region31: #{tpu_custom_call.1} parent=1 // pred_check_branch
      %189 = sbr.rel (0) target = $region33
    $region32: #{tpu_custom_call.1} parent=1 // pred_region
      %190 = dma.done [#allocation5], 256
    $region33: #{tpu_custom_call.1} parent=1 // pred_fallthru
      _
    %191 = vsyncpa [#allocation4], 1
    %192 = vsyncpa [#allocation5], 1

</llo_original>
